<compile_context>
chip_gen: v5e
topology: v5e:2x2
jax: 0.10.0
libtpu: 0.0.40
codegen_flags: <defaults>
</compile_context>

<pallas_src>
import math

import numpy as np
import jax
import jax.numpy as jnp
from jax.experimental import pallas as pl
from jax.experimental.pallas import tpu as pltpu


def _cdiv(a, b):
    return (a + b - 1) // b


def _round_up(x, m):
    return ((x + m - 1) // m) * m


# ---------------------------------------------------------------------------
# Kernels
# ---------------------------------------------------------------------------
def _sinusoidal_kernel(time_ref, tab_ref, out_ref):
    """Standard layout: time (TB, 1), tab (2, dim), out (TB, dim)."""
    t = time_ref[...]                      # (TB, 1) f32
    freq = tab_ref[0:1, :]                 # (1, dim)
    phase = tab_ref[1:2, :]                # (1, dim): 0 -> sin, pi/2 -> cos
    out_ref[...] = jnp.sin(t * freq + phase).astype(out_ref.dtype)


def _sinusoidal_kernel_folded(time_ref, tab_ref, spread_ref, out_ref):
    """Lane-dense layout: time (TBF, r), tab (2, 128), spread (r, 128), out (TBF, 128).

    Each 128-lane output row packs r = 128//dim consecutive batch rows.
    t is spread across the r lane groups via a one-hot matmul (idle MXU).
    """
    t = time_ref[...]                      # (TBF, r) f32
    freq = tab_ref[0:1, :]                 # (1, 128), dim-periodic
    phase = tab_ref[1:2, :]                # (1, 128), dim-periodic
    spread = spread_ref[...]               # (r, 128) one-hot (lane j -> col j//dim)
    t_full = jnp.dot(t, spread, preferred_element_type=jnp.float32)   # (TBF, 128)
    out_ref[...] = jnp.sin(t_full * freq + phase).astype(out_ref.dtype)


# ---------------------------------------------------------------------------
# Wrapper
# ---------------------------------------------------------------------------
def sinusoidal_positional_embeddings(time, dim, *,
                                     out_dtype=jnp.float32,
                                     max_block_rows=2048,
                                     vmem_budget_bytes=24 << 20):
    """JAX/Pallas equivalent of SinusoidalPositionalEmbeddings(dim)(time)."""
    assert time.ndim == 1, "time must be a 1-D tensor of timesteps"
    assert dim % 2 == 0 and dim >= 4, "dim must be even and >= 4"
    B = int(time.shape[0])
    assert B >= 1

    half_dim = dim // 2
    out_bytes = jnp.dtype(out_dtype).itemsize
    row_align = 8 if out_bytes >= 4 else 16          # sublane granule (f32 vs bf16)

    # ---- frequency / phase tables, hoisted out of the kernel (static in dim)
    scale = math.log(10000.0) / (half_dim - 1)
    freq_half = np.exp(-scale * np.arange(half_dim, dtype=np.float64)).astype(np.float32)
    freq = np.repeat(freq_half, 2)                                        # (dim,)
    phase = np.tile(np.array([0.0, math.pi / 2.0], np.float32), half_dim)  # (dim,)

    t32 = time.astype(jnp.float32)

    use_fold = (dim < 128) and (128 % dim == 0) and ((B * dim) % 128 == 0)

    if use_fold:
        r = 128 // dim
        rows_total = (B * dim) // 128
        lanes = 128
        tab_np = np.stack([np.tile(freq, r), np.tile(phase, r)], axis=0)   # (2, 128)
        lane = np.arange(128)
        spread_np = (lane[None, :] // dim == np.arange(r)[:, None]).astype(np.float32)
        kernel = _sinusoidal_kernel_folded
        time_in = t32.reshape(rows_total, r)
        time_block_cols = r
    else:
        r = 1
        rows_total = B
        lanes = dim
        tab_np = np.stack([freq, phase], axis=0)                           # (2, dim)
        spread_np = None
        kernel = _sinusoidal_kernel
        time_in = t32.reshape(B, 1)
        time_block_cols = 1
        # TODO(synk): dim < 128 with B % (128//dim) != 0 still uses lane-masked
        # stores; padding B for that rare case would re-introduce a slice copy.

    # ---- tile size: VMEM-budgeted, double-buffered, multiple of row_align ---
    lane_pad = _round_up(lanes, 128)
    out_row_vmem = lane_pad * out_bytes              # per output row, per buffer
    time_row_vmem = 128 * 4                          # (rows, <=128) f32 pads to 128 lanes
    tab_vmem = _round_up(tab_np.shape[0], 8) * _round_up(tab_np.shape[1], 128) * 4
    spread_vmem = 0 if spread_np is None else _round_up(spread_np.shape[0], 8) * 128 * 4
    const_vmem = 2 * (tab_vmem + spread_vmem)
    per_row = 2 * out_row_vmem + 2 * time_row_vmem   # double-buffered in + out
    budget_rows = max(row_align, (vmem_budget_bytes - const_vmem) // per_row)

    tb = min(int(max_block_rows), int(budget_rows))
    if tb >= rows_total:
        tb = rows_total                              # one full block (always legal)
    else:
        tb = max(row_align, (tb // row_align) * row_align)
    n_steps = _cdiv(rows_total, tb)

    # >=2 grid steps for non-trivial outputs so both v7x TensorCores get work.
    if (n_steps == 1 and rows_total >= 2 * row_align
            and rows_total * lanes * out_bytes >= (1 << 20)):
        tb = _round_up(_cdiv(rows_total, 2), row_align)
        n_steps = _cdiv(rows_total, tb)

    vmem_needed = tb * per_row + const_vmem
    vmem_limit = int(min(64 << 20, max(16 << 20, vmem_needed + (4 << 20))))

    cost = pl.CostEstimate(
        flops=2 * B * dim + (2 * rows_total * lanes * r if use_fold else 0),
        transcendentals=B * dim,
        bytes_accessed=B * dim * out_bytes + B * 4 + int(tab_np.size) * 4)

    in_specs = [
        pl.BlockSpec((int(tb), int(time_block_cols)), lambda i: (i, 0)),
        pl.BlockSpec((int(tab_np.shape[0]), int(tab_np.shape[1])), lambda i: (0, 0)),
    ]
    operands = [time_in, jnp.asarray(tab_np)]
    if use_fold:
        in_specs.append(pl.BlockSpec((int(spread_np.shape[0]), 128), lambda i: (0, 0)))
        operands.append(jnp.asarray(spread_np))

    out = pl.pallas_call(
        kernel,
        out_shape=jax.ShapeDtypeStruct((rows_total, lanes), out_dtype),
        grid=(int(n_steps),),
        in_specs=in_specs,
        out_specs=pl.BlockSpec((int(tb), int(lanes)), lambda i: (i, 0)),
        compiler_params=pltpu.CompilerParams(
            dimension_semantics=("parallel",),
            vmem_limit_bytes=vmem_limit),
        cost_estimate=cost,
    )(*operands)

    # Row-major reshape back to (B, dim) is a metadata-only view of the fold.
    return out.reshape(B, dim) if use_fold else out


# ---------------------------------------------------------------------------
# Reference + self-test
# ---------------------------------------------------------------------------
def _reference(time, dim):
    half_dim = dim // 2
    emb = math.log(10000.0) / (half_dim - 1)
    emb = jnp.exp(jnp.arange(half_dim, dtype=jnp.float32) * -emb)
    emb = time.astype(jnp.float32)[:, None] * emb[None, :]
    out = jnp.zeros((time.shape[0], dim), jnp.float32)
    out = out.at[:, 0::2].set(jnp.sin(emb))
    out = out.at[:, 1::2].set(jnp.cos(emb))
    return out


if __name__ == "__main__":
    key = jax.random.PRNGKey(0)
    # (B, dim): fold path (dim=32, 64), standard path (dim=256), and the
    # non-foldable fallback (B % (128//dim) != 0).
    configs = [(8, 32), (8, 256), (6, 64), (5, 32)]
    for (B, D) in configs:
        key, sub = jax.random.split(key)
        t = jax.random.uniform(sub, (B,), jnp.float32, minval=0.0, maxval=1000.0)
        out = jax.block_until_ready(sinusoidal_positional_embeddings(t, D))
        ref = _reference(t, D)
        assert out.shape == (B, D) and out.dtype == jnp.float32, (B, D, out.shape, out.dtype)
        err = float(jnp.max(jnp.abs(out - ref)))
        assert jnp.allclose(out, ref, atol=1e-4, rtol=1e-5), (B, D, err)
    print("KERNEL_OK")
</pallas_src>

<mosaic_0001>
module attributes {stable_mosaic.version = 11 : i64} {
  func.func @_sinusoidal_kernel_folded(%arg0: i32, %arg1: memref<2x4xf32, #tpu.memory_space<vmem>>, %arg2: memref<2x128xf32, #tpu.memory_space<vmem>>, %arg3: memref<4x128xf32, #tpu.memory_space<vmem>>, %arg4: memref<2x128xf32, #tpu.memory_space<vmem>>) attributes {dimension_semantics = [#tpu.dimension_semantics<parallel>], iteration_bounds = array<i64: 1>, scalar_prefetch = 0 : i64, scratch_operands = 0 : i64, tpu.core_type = #tpu.core_type<tc>, window_params = [{transform_indices = @transform_0, window_bounds = array<i64: 2, 4>}, {pipeline_mode = #tpu.pipeline_mode<synchronous>, transform_indices = @transform_1, window_bounds = array<i64: 2, 128>}, {pipeline_mode = #tpu.pipeline_mode<synchronous>, transform_indices = @transform_2, window_bounds = array<i64: 4, 128>}, {transform_indices = @transform_3, window_bounds = array<i64: 2, 128>}]} {
    %c0 = arith.constant 0 : index
    %c0_0 = arith.constant 0 : index
    %0 = vector.load %arg1[%c0, %c0_0] : memref<2x4xf32, #tpu.memory_space<vmem>>, vector<2x4xf32>
    %c0_1 = arith.constant 0 : index
    %c0_2 = arith.constant 0 : index
    %1 = vector.load %arg2[%c0_1, %c0_2] : memref<2x128xf32, #tpu.memory_space<vmem>>, vector<1x128xf32>
    %c1 = arith.constant 1 : index
    %c0_3 = arith.constant 0 : index
    %2 = vector.load %arg2[%c1, %c0_3] : memref<2x128xf32, #tpu.memory_space<vmem>>, vector<1x128xf32>
    %c0_4 = arith.constant 0 : index
    %c0_5 = arith.constant 0 : index
    %3 = vector.load %arg3[%c0_4, %c0_5] : memref<4x128xf32, #tpu.memory_space<vmem>>, vector<4x128xf32>
    %cst = arith.constant dense<0.000000e+00> : vector<2x128xf32>
    %4 = tpu.matmul %0, %3, %cst {dimension_numbers = #tpu.dot_dimension_numbers<[1], [0], [0], [1], [0, 0, 1, 1], [], []>} : vector<2x4xf32>, vector<4x128xf32>, vector<2x128xf32> -> vector<2x128xf32>
    %5 = vector.broadcast %1 : vector<1x128xf32> to vector<2x128xf32>
    %6 = arith.mulf %4, %5 : vector<2x128xf32>
    %7 = vector.broadcast %2 : vector<1x128xf32> to vector<2x128xf32>
    %8 = arith.addf %6, %7 : vector<2x128xf32>
    %9 = math.sin %8 : vector<2x128xf32>
    %c0_6 = arith.constant 0 : index
    %c0_7 = arith.constant 0 : index
    %10 = vector.load %arg4[%c0_6, %c0_7] : memref<2x128xf32, #tpu.memory_space<vmem>>, vector<2x128xf32>
    tpu.vector_store %arg4[%c0_6, %c0_7], %9 {strides = array<i32>} : memref<2x128xf32, #tpu.memory_space<vmem>>, vector<2x128xf32>,
    return
  }
  func.func @transform_0(%arg0: i32) -> (i32, i32) {
    %c0_i32 = arith.constant 0 : i32
    %c0_i32_0 = arith.constant 0 : i32
    return %arg0, %c0_i32 : i32, i32
  }
  func.func @transform_1(%arg0: i32) -> (i32, i32) {
    %c0_i32 = arith.constant 0 : i32
    %c0_i32_0 = arith.constant 0 : i32
    %c0_i32_1 = arith.constant 0 : i32
    return %c0_i32, %c0_i32_0 : i32, i32
  }
  func.func @transform_2(%arg0: i32) -> (i32, i32) {
    %c0_i32 = arith.constant 0 : i32
    %c0_i32_0 = arith.constant 0 : i32
    %c0_i32_1 = arith.constant 0 : i32
    return %c0_i32, %c0_i32_0 : i32, i32
  }
  func.func @transform_3(%arg0: i32) -> (i32, i32) {
    %c0_i32 = arith.constant 0 : i32
    %c0_i32_0 = arith.constant 0 : i32
    return %arg0, %c0_i32 : i32, i32
  }
}

</mosaic_0001>

<llo_original>
// kernel: tpu_custom_call.1
$region0: #{tpu_custom_call.1}
  #allocation0 [shape = 'u32[]', space=smem, size = 0x4, offset = 0x4, fixed_abs, tag = 'smem constant byte address 0x4 - core index']
  #allocation1 [shape = 'u32[72,128]{1,0:T(1,128)}', space=vmem, size = 0x9000, scoped, tag = 'internal scratch']
  %s0 = inlined_call_operand.hbm [shape: f32[2,4], index: 0, kind: input, shape index: {}]
  %s1 = inlined_call_operand.hbm [shape: f32[2,128], index: 1, kind: input, shape index: {}]
  %s2 = inlined_call_operand.hbm [shape: f32[4,128], index: 2, kind: input, shape index: {}]
  %s3 = inlined_call_operand.hbm [shape: f32[2,128], index: 3, kind: output, shape index: {}]
  %s4 = sld [smem:[#allocation0]]
  $region34: #{tpu_custom_call.1} parent=0
    _
  %s6 = ssub.s32 1, %s4
  %s7 = scalar_select 0, %s6, %s4
  $region1: #{tpu_custom_call.1} parent=0
    #allocation2 [shape = 'u8[1024]{0}', space=vmem, size = 0x400, scoped, tag = 'input window, operand 0, single buffered']
    #allocation3 [shape = 's32[1]{0}', space=sflag, size = 0x4, scoped, tag = 'scoped memory for tpu_custom_call.1']
    #allocation4 [shape = 's32[1]{0}', space=sflag, size = 0x4, scoped, tag = 'scoped memory for tpu_custom_call.1']
    #allocation5 [shape = 'u8[1024]{0}', space=vmem, size = 0x400, scoped, tag = 'input window, operand 1, single buffered']
    #allocation6 [shape = 's32[1]{0}', space=sflag, size = 0x4, scoped, tag = 'scoped memory for tpu_custom_call.1']
    #allocation7 [shape = 'u8[2048]{0}', space=vmem, size = 0x800, scoped, tag = 'input window, operand 2, single buffered']
    #allocation8 [shape = 'u8[1024]{0}', space=vmem, size = 0x400, scoped, tag = 'output window, operand 0, single buffered']
    %8 = vsyncpa [#allocation3], 0
    %9 = vsyncpa [#allocation6], 0
    %10 = vsyncpa [#allocation4], 0
    // Predicated region
    $region2: #{tpu_custom_call.1} parent=1 // pred_check
      _
    $region3: #{tpu_custom_call.1} parent=1 // pred_check_branch
      %12 = sbr.rel (0) target = $region5
    $region4: #{tpu_custom_call.1} parent=1 // pred_region
      %14 = vsyncadd [#allocation3], 0
      %s16 = sshll.u32 %s0, 4
      %s17 = int_to_ptr.hbm [resolvable:$true] %s16
      %s18 = sshll.u32 [#allocation2], 4
      %s19 = int_to_ptr.vmem [resolvable:$true] %s18
      %21 = dma.hbm_to_vmem [thread:$0]  %s17, 32, %s19, [#allocation3]
    $region5: #{tpu_custom_call.1} parent=1 // pred_fallthru
      _
    // Predicated region
    $region6: #{tpu_custom_call.1} parent=1 // pred_check
      _
    $region7: #{tpu_custom_call.1} parent=1 // pred_check_branch
      %23 = sbr.rel (0) target = $region9
    $region8: #{tpu_custom_call.1} parent=1 // pred_region
      %25 = vsyncadd [#allocation6], 0
      %s27 = sshll.u32 %s1, 4
      %s28 = int_to_ptr.hbm [resolvable:$true] %s27
      %s29 = sshll.u32 [#allocation5], 4
      %s30 = int_to_ptr.vmem [resolvable:$true] %s29
      %32 = dma.hbm_to_vmem [thread:$0]  %s28, 32, %s30, [#allocation6]
    $region9: #{tpu_custom_call.1} parent=1 // pred_fallthru
      _
    // Predicated region
    $region10: #{tpu_custom_call.1} parent=1 // pred_check
      _
    $region11: #{tpu_custom_call.1} parent=1 // pred_check_branch
      %34 = sbr.rel (0) target = $region13
    $region12: #{tpu_custom_call.1} parent=1 // pred_region
      %36 = vsyncadd [#allocation6], 0
      %s38 = sshll.u32 %s2, 4
      %s39 = int_to_ptr.hbm [resolvable:$true] %s38
      %s40 = sshll.u32 [#allocation7], 4
      %s41 = int_to_ptr.vmem [resolvable:$true] %s40
      %43 = dma.hbm_to_vmem [thread:$0]  %s39, 64, %s41, [#allocation6]
    $region13: #{tpu_custom_call.1} parent=1 // pred_fallthru
      _
    // Predicated region
    $region14: #{tpu_custom_call.1} parent=1 // pred_check
      _
    $region15: #{tpu_custom_call.1} parent=1 // pred_check_branch
      %45 = sbr.rel (0) target = $region17
    $region16: #{tpu_custom_call.1} parent=1 // pred_region
      %47 = dma.done [#allocation3], 32
    $region17: #{tpu_custom_call.1} parent=1 // pred_fallthru
      _
    // Predicated region
    $region18: #{tpu_custom_call.1} parent=1 // pred_check
      _
    $region19: #{tpu_custom_call.1} parent=1 // pred_check_branch
      %49 = sbr.rel (0) target = $region21
    $region20: #{tpu_custom_call.1} parent=1 // pred_region
      %51 = dma.done [#allocation6], 32
    $region21: #{tpu_custom_call.1} parent=1 // pred_fallthru
      _
    // Predicated region
    $region22: #{tpu_custom_call.1} parent=1 // pred_check
      _
    $region23: #{tpu_custom_call.1} parent=1 // pred_check_branch
      %53 = sbr.rel (0) target = $region25
    $region24: #{tpu_custom_call.1} parent=1 // pred_region
      %55 = dma.done [#allocation6], 64
    $region25: #{tpu_custom_call.1} parent=1 // pred_fallthru
      _
    %v56 = vld [vmem:[#allocation2] sm:$0x3]
    %v57 = vld [vmem:[#allocation5] sm:$0x1]
    %v58 = vld [vmem:[#allocation5 + $0x1] sm:$0x1]
    %v59 = vld [vmem:[#allocation7] sm:$0xf]
    %vm60 = vcmask 31744
    %v62 = vsel %vm60, %v56, 0
    %vm64 = vcmask 1043456
    %v66 = vsel %vm64, %v59, 0
    %68 = vmatpush.msra.mxu0 0.0
    %69 = vmatpush.msra.mxu0 0.0
    %70 = vmatpush.msra.mxu0 0.0
    %71 = vmatpush.msra.mxu0 0.0
    %72 = vmatpush.msra.mxu0 0.0
    %73 = vmatpush.msra.mxu0 0.0
    %74 = vmatpush.msra.mxu0 0.0
    %75 = vmatpush.msra.mxu0 0.0
    %76 = vmatpush.msra.mxu0 0.0
    %77 = vmatpush.msra.mxu0 0.0
    %78 = vmatpush.msra.mxu0 0.0
    %79 = vmatpush.msra.mxu0 0.0
    %80 = vmatpush.msra.mxu0 0.0
    %81 = vmatpush.msra.mxu0 0.0
    %82 = vmatpush.msra.mxu0 0.0
    %83 = vmatpush.msra.mxu0 %v66
    %84 = vmatmul.f32.gmra.mxu0 %v62
    %v85 = vpop.f32.mrf.mxu0
    %v86 = vadd.f32 0.0, %v85
    %87 = vdwg.mxu0
    %v88 = vperm.slane %v57, 0
    %v89 = vmul.f32 %v86, %v88
    %v90 = vperm.slane %v58, 0
    %v91 = vadd.f32 %v89, %v90
    %v92 = vand.u32 2147483647, %v91
    %vm93 = vcmp.le.f32.partialorder %v92, 0.7853982
    %vm94 = vcmp.lt.s32.totalorder %v91, 0
    %v95 = vand.u32 %v91, 2139095040
    %v96 = vshrl.u32 %v95, 23
    %v97 = vsub.s32 %v96, 127
    %v98 = vand.u32 2147483647, %v91
    %v99 = vand.u32 %v98, 8388607
    %v100 = vor.u32 %v99, 8388608
    %v101 = vsub.s32 0, %v100
    %v102 = vadd.s32 %v97, 1
    %vm103 = vcmp.gt.s32.totalorder %v102, 0
    %v104 = vsel %vm103, %v102, 0
    %v105 = vshrl.u32 %v104, 5
    %v106 = vand.u32 %v104, 31
    %v107 = vsub.s32 32, %v106
    %v108 = vshrl.u32 683565275, %v107
    %v109 = vshll.u32 683565275, %v106
    %v110 = vshrl.u32 2475754826, %v107
    %v111 = vor.u32 %v109, %v110
    %v112 = vshll.u32 2475754826, %v106
    %v113 = vshrl.u32 2131351028, %v107
    %v114 = vor.u32 %v112, %v113
    %v115 = vshll.u32 2131351028, %v106
    %v116 = vshrl.u32 2102212464, %v107
    %v117 = vor.u32 %v115, %v116
    %v118 = vshll.u32 2102212464, %v106
    %v119 = vshrl.u32 920167782, %v107
    %v120 = vor.u32 %v118, %v119
    %v121 = vshll.u32 920167782, %v106
    %v122 = vshrl.u32 1326507024, %v107
    %v123 = vor.u32 %v121, %v122
    %vm124 = vcmp.lt.s32.totalorder %v105, 1
    %vm125 = vcmp.lt.s32.totalorder %v105, 2
    %vm126 = vcmp.lt.s32.totalorder %v105, 3
    %vm127 = vcmp.lt.s32.totalorder %v105, 4
    %v128 = vsel %vm124, %v108, %v111
    %v129 = vsel %vm127, %v117, 2102212464
    %v130 = vsel %vm126, %v114, %v129
    %v131 = vsel %vm125, %v128, %v130
    %v132 = vsel %vm124, %v111, %v114
    %v133 = vsel %vm127, %v120, 920167782
    %v134 = vsel %vm126, %v117, %v133
    %v135 = vsel %vm125, %v132, %v134
    %v136 = vsel %vm124, %v114, %v117
    %v137 = vsel %vm127, %v123, 1326507024
    %v138 = vsel %vm126, %v120, %v137
    %v139 = vsel %vm125, %v136, %v138
    %v140 = vshll.u32 %v100, 8
    %v141 = vand.u32 %v140, 65535
    %v142 = vshrl.u32 %v140, 16
    %v143 = vand.u32 %v139, 65535
    %v144 = vshrl.u32 %v139, 16
    %v145 = vmul.u32 %v141, %v143
    %v146 = vmul.u32 %v141, %v144
    %v147 = vmul.u32 %v142, %v143
    %v148 = vmul.u32 %v142, %v144
    %v149 = vshll.u32 %v146, 16
    %v150 = vshrl.u32 %v146, 16
    %v151 = vshll.u32 %v147, 16
    %v152 = vshrl.u32 %v147, 16
    %vm153 = vc.u32 %v145, %v149
    %v154 = vsel %vm153, 1, 0
    %v155 = vadd.s32 %v145, %v149
    %v156 = vadd.s32 %v148, %v154
    %vm157 = vc.u32 %v155, %v151
    %v158 = vsel %vm157, 1, 0
    %v159 = vadd.s32 %v155, %v151
    %v160 = vadd.s32 %v156, %v158
    %v161 = vadd.s32 %v160, %v150
    %v162 = vadd.s32 %v161, %v152
    %v163 = vand.u32 %v140, 65535
    %v164 = vshrl.u32 %v140, 16
    %v165 = vand.u32 %v135, 65535
    %v166 = vshrl.u32 %v135, 16
    %v167 = vmul.u32 %v163, %v165
    %v168 = vmul.u32 %v163, %v166
    %v169 = vmul.u32 %v164, %v165
    %v170 = vmul.u32 %v164, %v166
    %v171 = vshll.u32 %v168, 16
    %v172 = vshrl.u32 %v168, 16
    %v173 = vshll.u32 %v169, 16
    %v174 = vshrl.u32 %v169, 16
    %vm175 = vc.u32 %v167, %v171
    %v176 = vsel %vm175, 1, 0
    %v177 = vadd.s32 %v167, %v171
    %v178 = vadd.s32 %v170, %v176
    %vm179 = vc.u32 %v177, %v173
    %v180 = vsel %vm179, 1, 0
    %v181 = vadd.s32 %v177, %v173
    %v182 = vadd.s32 %v178, %v180
    %v183 = vadd.s32 %v182, %v172
    %v184 = vadd.s32 %v183, %v174
    %v185 = vmul.u32 %v140, %v131
    %v186 = vadd.s32 %v162, %v181
    %vm187 = vc.u32 %v162, %v181
    %v188 = vadd.s32 %v184, 1
    %v189 = vsel %vm187, %v188, %v184
    %v190 = vadd.s32 %v185, %v189
    %v191 = vadd.s32 %v190, 536870912
    %v192 = vshrl.u32 %v191, 30
    %v193 = vshll.u32 %v192, 30
    %v194 = vsub.s32 %v190, %v193
    %vm195 = vcmp.lt.s32.totalorder %v194, 0
    %v196 = vsub.s32 0, %v194
    %v197 = vsel %vm195, %v196, %v194
    %v198 = vclz %v197
    %v199 = vsub.s32 %v198, 2
    %vm200 = vcmp.gt.s32.totalorder 0, %v199
    %v201 = vsel %vm200, 0, %v199
    %v202 = vsub.s32 32, %v201
    %v203 = vshll.u32 %v194, %v201
    %v204 = vshrl.u32 %v186, %v202
    %v205 = vor.u32 %v203, %v204
    %v206 = vsub.s32 4294967266, %v201
    %v207 = vadd.s32 %v206, 127
    %v208 = vshll.u32 %v207, 23
    %v209 = vor.u32 4788187, %v208
    %v210 = vand.u32 2147483647, %v209
    %v212 = vcvt.s32.f32 %v205
    %v213 = vmul.f32 %v212, %v210
    %v214 = vxor.u32 %v213, 2147483648
    %v215 = vsel %vm94, %v214, %v213
    %v216 = vsub.s32 4, %v192
    %v217 = vsel %vm94, %v216, %v192
    %v218 = vsel %vm93, %v91, %v215
    %v219 = vsel %vm93, 0, %v217
    %v220 = vmul.f32 %v218, %v218
    %v221 = vmul.f32 %v220, -0.001358992
    %v222 = vadd.f32 %v221, 0.041655596
    %v223 = vmul.f32 %v220, %v222
    %v224 = vadd.f32 %v223, -0.4999988
    %v225 = vmul.f32 %v220, %v224
    %v226 = vadd.f32 1.0, %v225
    %v227 = vmul.f32 %v218, %v218
    %v228 = vmul.f32 %v227, -0.00019511016
    %v229 = vadd.f32 %v228, 0.008332121
    %v230 = vmul.f32 %v227, %v229
    %v231 = vadd.f32 %v230, -0.16666654
    %v232 = vmul.f32 %v227, %v231
    %v233 = vadd.f32 %v232, 1.0
    %v234 = vmul.f32 %v233, %v218
    %vm235 = vweird.f32 %v91
    %v236 = vadd.s32 %v219, 3
    %v237 = vand.u32 %v236, 3
    %vm238 = vcmp.lt.s32.totalorder %v237, 2
    %vm239 = vcmp.eq.s32.totalorder %v237, 0
    %v240 = vxor.u32 %v234, 2147483648
    %v241 = vsel %vm239, %v226, %v240
    %vm242 = vcmp.eq.s32.totalorder %v237, 2
    %v243 = vxor.u32 %v226, 2147483648
    %v244 = vsel %vm242, %v243, %v234
    %v245 = vsel %vm238, %v241, %v244
    %v246 = vsel %vm235, nan, %v245
    %247 = vst [vmem:[#allocation8] sm:$0x3] %v246
    // Predicated region
    $region26: #{tpu_custom_call.1} parent=1 // pred_check
      _
    $region27: #{tpu_custom_call.1} parent=1 // pred_check_branch
      %249 = sbr.rel (0) target = $region29
    $region28: #{tpu_custom_call.1} parent=1 // pred_region
      %251 = vsyncadd [#allocation4], 0
      %s253 = sshll.u32 [#allocation8], 4
      %s254 = int_to_ptr.vmem [resolvable:$true] %s253
      %s255 = sshll.u32 %s3, 4
      %s256 = int_to_ptr.hbm [resolvable:$true] %s255
      %258 = dma.vmem_to_hbm [thread:$0]  %s254, 32, %s256, [#allocation4]
    $region29: #{tpu_custom_call.1} parent=1 // pred_fallthru
      _
    // Predicated region
    $region30: #{tpu_custom_call.1} parent=1 // pred_check
      _
    $region31: #{tpu_custom_call.1} parent=1 // pred_check_branch
      %260 = sbr.rel (0) target = $region33
    $region32: #{tpu_custom_call.1} parent=1 // pred_region
      %262 = dma.done [#allocation4], 32
    $region33: #{tpu_custom_call.1} parent=1 // pred_fallthru
      _
    %263 = vsyncpa [#allocation3], 1
    %264 = vsyncpa [#allocation6], 1
    %265 = vsyncpa [#allocation4], 1

</llo_original>
